<compile_context>
chip_gen: v7x
topology: tpu7x:2x2x1
jax: 0.10.0
libtpu: 0.0.40
codegen_flags: <defaults>
</compile_context>

<pallas_src>
import numpy as np
import jax
import jax.numpy as jnp
from jax.experimental import pallas as pl
from jax.experimental.pallas import tpu as pltpu

BN_EPS = 1e-5    # PyTorch BatchNorm default eps
RMS_EPS = 1e-6   # RMSNorm eps from the module
DP = 128         # lane-padded feature dim


def toeplitz(k, in_len):
    """T such that (T @ v)[h] = sum_i k[i] * v[h + i]  (valid cross-correlation, = PyTorch conv)."""
    kd = k.shape[0]
    L = in_len - kd + 1
    h = jnp.arange(L)[:, None]
    n = jnp.arange(in_len)[None, :]
    j = n - h
    valid = (j >= 0) & (j < kd)
    return jnp.where(valid, k[jnp.clip(j, 0, kd - 1)], 0.0).astype(jnp.float32)


def _round_up(v, m):
    return ((v + m - 1) // m) * m


def prepare_packed(params, B, N, D):
    """One-time packing (hoisted out of the per-forward path): constant folding,
    Toeplitz construction, block-diagonalization, broadcast/selection matrix, padding."""
    L1 = N - D + 1
    BN = B * N
    MP = _round_up(BN, 8)            # sublane-padded row count (62 -> 64)
    BL1P = _round_up(B * L1, 8)      # rows of the Toeplitz stage output
    bn_inv = float(1.0 / np.sqrt(1.0 + BN_EPS))   # eval-mode BatchNorm, default running stats

    # --- long-skip stage 1: block-diagonal Toeplitz with bn_inv folded, padded to (BL1P, MP)
    t1 = toeplitz(params['k1'], N) * bn_inv                          # (L1, N)
    t1_pack = jnp.zeros((BL1P, MP), jnp.float32)
    for b in range(B):                                               # B static, done once
        t1_pack = t1_pack.at[b * L1:(b + 1) * L1, b * N:(b + 1) * N].set(t1)

    # --- long-skip stage 2 + broadcast over seq as one selection matmul (0.2 folded):
    # S_full[r, b*L1 + i] = 0.2 * k2[i] for b = r // N (valid rows); pad rows/cols zero.
    s_row = (0.2 * params['k2'].astype(jnp.float32))[None, :]        # (1, L1)
    s_pack = jnp.zeros((MP, BL1P), jnp.float32)
    for b in range(B):
        s_pack = s_pack.at[b * N:(b + 1) * N, b * L1:(b + 1) * L1].set(
            jnp.tile(s_row, (N, 1)))

    # --- short-skip weights/biases + RMSNorm scale + long-skip biases, lane-padded to DP
    SPR = _round_up(2 * DP + 5, 8)                                   # 264 rows
    sp = jnp.zeros((SPR, DP), jnp.float32)
    sp = sp.at[0:D, 0:D].set(params['w1t'].astype(jnp.float32) * bn_inv)        # w1' = bn_inv*w1
    sp = sp.at[DP:DP + D, 0:D].set(0.2 * params['w2t'].astype(jnp.float32))     # w2' = 0.2*w2
    sp = sp.at[2 * DP, 0:D].set((params['b1'] * bn_inv).reshape(D))             # b1' = bn_inv*b1
    sp = sp.at[2 * DP + 1, 0:D].set((0.2 * params['b2']).reshape(D))            # b2' = 0.2*b2
    sp = sp.at[2 * DP + 2, 0:D].set(params['scale'].reshape(D))                 # RMSNorm scale
    sp = sp.at[2 * DP + 3, 0:D].set(jnp.broadcast_to(params['lb1'] * bn_inv, (D,)))   # lb1'
    sp = sp.at[2 * DP + 4, 0:D].set(jnp.broadcast_to(0.2 * params['lb2'], (D,)))      # lb2'

    return {'short_pack': sp, 't1_pack': t1_pack, 's_pack': s_pack}


def make_residual_forward(B, N, D):
    L1 = N - D + 1
    BN = B * N
    MP = _round_up(BN, 8)
    BL1P = _round_up(B * L1, 8)
    SPR = _round_up(2 * DP + 5, 8)
    inv_d = float(1.0 / D)

    def residual_kernel(x_ref, sp_ref, t1_ref, s_ref, o_ref):
        x = x_ref[...]                                   # (MP, DP): rows+lanes padded with zeros

        w1 = sp_ref[0:DP, :]                             # (DP, DP), bn_inv folded
        w2 = sp_ref[DP:2 * DP, :]                        # (DP, DP), 0.2 folded
        b1 = sp_ref[2 * DP:2 * DP + 1, :]                # (1, DP), zero pad lanes
        b2 = sp_ref[2 * DP + 1:2 * DP + 2, :]
        scale = sp_ref[2 * DP + 2:2 * DP + 3, :]
        lb1 = sp_ref[2 * DP + 3:2 * DP + 4, :]
        lb2 = sp_ref[2 * DP + 4:2 * DP + 5, :]

        # --- short skip: Conv1d(k=1) -> BN -> ReLU -> Conv1d(k=1); constants pre-folded ---
        h = jnp.maximum(jnp.dot(x, w1, preferred_element_type=jnp.float32) + b1, 0.0)
        short = jnp.dot(h, w2, preferred_element_type=jnp.float32) + b2        # (MP, DP)

        # --- long skip stage 1: Conv2d(1,1,(D,1)) as one block-diagonal Toeplitz matmul ---
        y1 = jnp.maximum(
            jnp.dot(t1_ref[...], x, preferred_element_type=jnp.float32) + lb1, 0.0)  # (BL1P, DP)

        # --- long skip stage 2 + broadcast over seq: single selection matmul on the MXU ---
        lng = jnp.dot(s_ref[...], y1, preferred_element_type=jnp.float32) + lb2      # (MP, DP)

        # out = fn(x) + 0.2*short_residual + 0.2*long_residual   (fn = identity; 0.2 folded)
        out = x + short + lng

        # --- SiLU(RMSNorm(out)); pad lanes are zero so sum(.)/D is exact; one full store ---
        ms = jnp.sum(out * out, axis=-1, keepdims=True) * inv_d
        normed = out * jax.lax.rsqrt(ms + RMS_EPS) * scale
        o_ref[...] = normed * jax.nn.sigmoid(normed)

    vmem = pl.BlockSpec(memory_space=pltpu.MemorySpace.VMEM)
    cost = pl.CostEstimate(
        flops=int(2 * MP * DP * DP * 2 + 2 * BL1P * MP * DP + 2 * MP * BL1P * DP
                  + 12 * MP * DP),
        transcendentals=int(2 * MP * DP),
        bytes_accessed=int(4 * (2 * MP * DP + SPR * DP + BL1P * MP + MP * BL1P)),
    )

    call = pl.pallas_call(
        residual_kernel,
        out_shape=jax.ShapeDtypeStruct((MP, DP), jnp.float32),
        in_specs=[vmem, vmem, vmem, vmem],
        out_specs=vmem,
        input_output_aliases={0: 0},      # donate the x slab as the output buffer
        cost_estimate=cost,
    )

    @jax.jit
    def forward(x, packed):
        x2 = x.reshape(BN, D)
        x_pad = jnp.pad(x2, ((0, MP - BN), (0, DP - D)))     # sublane/lane-dense slab
        out = call(x_pad, packed['short_pack'], packed['t1_pack'], packed['s_pack'])
        return out[:BN, :D].reshape(B, N, D)

    return forward


def reference(x, params):
    """Pure-JAX reference of the same forward pass (for validation)."""
    bn_inv = 1.0 / np.sqrt(1.0 + BN_EPS)
    h = jnp.maximum((x @ params['w1t'] + params['b1']) * bn_inv, 0.0)
    short = h @ params['w2t'] + params['b2']

    def seq_conv(v, k, bias):
        _, n, _ = v.shape
        kd = k.shape[0]
        cols = [jnp.sum(v[:, i:i + kd, :] * k[None, :, None], axis=1)
                for i in range(n - kd + 1)]
        return jnp.stack(cols, axis=1) + bias

    y1 = jnp.maximum(seq_conv(x, params['k1'], params['lb1']) * bn_inv, 0.0)
    lng = seq_conv(y1, params['k2'], params['lb2'])
    out = x + 0.2 * short + 0.2 * lng
    normed = out * jax.lax.rsqrt(jnp.mean(out * out, axis=-1, keepdims=True) + RMS_EPS) \
             * params['scale']
    return normed * jax.nn.sigmoid(normed)


if __name__ == "__main__":
    D = 16               # dim
    N = 2 * D - 1        # required by the module so long_skip output broadcasts
    B = 2

    key = jax.random.PRNGKey(0)
    kx, kp = jax.random.split(key)
    x = jax.random.normal(kx, (B, N, D), dtype=jnp.float32)

    ks = jax.random.split(kp, 8)
    s = 1.0 / np.sqrt(D)
    params = {
        # short_skip Conv1d(D, D, k=1) weights, stored pre-transposed as (in, out)
        'w1t': jax.random.uniform(ks[0], (D, D), jnp.float32, -s, s),
        'b1':  jax.random.uniform(ks[1], (1, D), jnp.float32, -s, s),
        'w2t': jax.random.uniform(ks[2], (D, D), jnp.float32, -s, s),
        'b2':  jax.random.uniform(ks[3], (1, D), jnp.float32, -s, s),
        # long_skip Conv2d(1, 1, (D, 1)) kernels (length-D conv along the seq axis)
        'k1':  jax.random.uniform(ks[4], (D,), jnp.float32, -s, s),
        'lb1': jax.random.uniform(ks[5], (), jnp.float32, -s, s),
        'k2':  jax.random.uniform(ks[6], (D,), jnp.float32, -s, s),
        'lb2': jax.random.uniform(ks[7], (), jnp.float32, -s, s),
        # RMSNorm scale (init = ones)
        'scale': jnp.ones((1, D), jnp.float32),
    }

    packed = prepare_packed(params, B, N, D)          # one-time packing, outside hot path
    forward = make_residual_forward(B, N, D)

    out = forward(x, packed)
    jax.block_until_ready(out)

    ref = reference(x, params)
    np.testing.assert_allclose(np.asarray(out), np.asarray(ref), rtol=5e-2, atol=5e-2)
    print("KERNEL_OK")
</pallas_src>

<mosaic_0001>
module attributes {stable_mosaic.version = 11 : i64} {
  func.func @residual_kernel(%arg0: memref<64x128xf32, #tpu.memory_space<vmem>>, %arg1: memref<264x128xf32, #tpu.memory_space<vmem>>, %arg2: memref<32x64xf32, #tpu.memory_space<vmem>>, %arg3: memref<64x32xf32, #tpu.memory_space<vmem>>, %arg4: memref<64x128xf32, #tpu.memory_space<vmem>>) attributes {dimension_semantics = [], scalar_prefetch = 0 : i64, scratch_operands = 0 : i64, tpu.core_type = #tpu.core_type<tc>} {
    %c0 = arith.constant 0 : index
    %c0_0 = arith.constant 0 : index
    %0 = vector.load %arg0[%c0, %c0_0] : memref<64x128xf32, #tpu.memory_space<vmem>>, vector<64x128xf32>
    %c0_1 = arith.constant 0 : index
    %c0_2 = arith.constant 0 : index
    %1 = vector.load %arg1[%c0_1, %c0_2] : memref<264x128xf32, #tpu.memory_space<vmem>>, vector<128x128xf32>
    %c128 = arith.constant 128 : index
    %c0_3 = arith.constant 0 : index
    %2 = vector.load %arg1[%c128, %c0_3] : memref<264x128xf32, #tpu.memory_space<vmem>>, vector<128x128xf32>
    %c256 = arith.constant 256 : index
    %c0_4 = arith.constant 0 : index
    %3 = vector.load %arg1[%c256, %c0_4] : memref<264x128xf32, #tpu.memory_space<vmem>>, vector<1x128xf32>
    %c257 = arith.constant 257 : index
    %c0_5 = arith.constant 0 : index
    %4 = vector.load %arg1[%c257, %c0_5] : memref<264x128xf32, #tpu.memory_space<vmem>>, vector<1x128xf32>
    %c258 = arith.constant 258 : index
    %c0_6 = arith.constant 0 : index
    %5 = vector.load %arg1[%c258, %c0_6] : memref<264x128xf32, #tpu.memory_space<vmem>>, vector<1x128xf32>
    %c259 = arith.constant 259 : index
    %c0_7 = arith.constant 0 : index
    %6 = vector.load %arg1[%c259, %c0_7] : memref<264x128xf32, #tpu.memory_space<vmem>>, vector<1x128xf32>
    %c260 = arith.constant 260 : index
    %c0_8 = arith.constant 0 : index
    %7 = vector.load %arg1[%c260, %c0_8] : memref<264x128xf32, #tpu.memory_space<vmem>>, vector<1x128xf32>
    %cst = arith.constant dense<0.000000e+00> : vector<64x128xf32>
    %8 = tpu.matmul %0, %1, %cst {dimension_numbers = #tpu.dot_dimension_numbers<[1], [0], [0], [1], [0, 0, 1, 1], [], []>} : vector<64x128xf32>, vector<128x128xf32>, vector<64x128xf32> -> vector<64x128xf32>
    %9 = vector.broadcast %3 : vector<1x128xf32> to vector<64x128xf32>
    %10 = arith.addf %8, %9 : vector<64x128xf32>
    %cst_9 = arith.constant 0.000000e+00 : f32
    %11 = vector.broadcast %cst_9 : f32 to vector<64x128xf32>
    %12 = arith.maximumf %10, %11 : vector<64x128xf32>
    %cst_10 = arith.constant dense<0.000000e+00> : vector<64x128xf32>
    %13 = tpu.matmul %12, %2, %cst_10 {dimension_numbers = #tpu.dot_dimension_numbers<[1], [0], [0], [1], [0, 0, 1, 1], [], []>} : vector<64x128xf32>, vector<128x128xf32>, vector<64x128xf32> -> vector<64x128xf32>
    %14 = vector.broadcast %4 : vector<1x128xf32> to vector<64x128xf32>
    %15 = arith.addf %13, %14 : vector<64x128xf32>
    %c0_11 = arith.constant 0 : index
    %c0_12 = arith.constant 0 : index
    %16 = vector.load %arg2[%c0_11, %c0_12] : memref<32x64xf32, #tpu.memory_space<vmem>>, vector<32x64xf32>
    %cst_13 = arith.constant dense<0.000000e+00> : vector<32x128xf32>
    %17 = tpu.matmul %16, %0, %cst_13 {dimension_numbers = #tpu.dot_dimension_numbers<[1], [0], [0], [1], [0, 0, 1, 1], [], []>} : vector<32x64xf32>, vector<64x128xf32>, vector<32x128xf32> -> vector<32x128xf32>
    %18 = vector.broadcast %6 : vector<1x128xf32> to vector<32x128xf32>
    %19 = arith.addf %17, %18 : vector<32x128xf32>
    %cst_14 = arith.constant 0.000000e+00 : f32
    %20 = vector.broadcast %cst_14 : f32 to vector<32x128xf32>
    %21 = arith.maximumf %19, %20 : vector<32x128xf32>
    %c0_15 = arith.constant 0 : index
    %c0_16 = arith.constant 0 : index
    %22 = vector.load %arg3[%c0_15, %c0_16] : memref<64x32xf32, #tpu.memory_space<vmem>>, vector<64x32xf32>
    %cst_17 = arith.constant dense<0.000000e+00> : vector<64x128xf32>
    %23 = tpu.matmul %22, %21, %cst_17 {dimension_numbers = #tpu.dot_dimension_numbers<[1], [0], [0], [1], [0, 0, 1, 1], [], []>} : vector<64x32xf32>, vector<32x128xf32>, vector<64x128xf32> -> vector<64x128xf32>
    %24 = vector.broadcast %7 : vector<1x128xf32> to vector<64x128xf32>
    %25 = arith.addf %23, %24 : vector<64x128xf32>
    %26 = arith.addf %0, %15 : vector<64x128xf32>
    %27 = arith.addf %26, %25 : vector<64x128xf32>
    %28 = arith.mulf %27, %27 : vector<64x128xf32>
    %cst_18 = arith.constant dense<0.000000e+00> : vector<64xf32>
    %29 = vector.multi_reduction <add>, %28, %cst_18 [1] : vector<64x128xf32> to vector<64xf32>
    %30 = vector.shape_cast %29 : vector<64xf32> to vector<64x1xf32>
    %cst_19 = arith.constant 6.250000e-02 : f32
    %31 = vector.broadcast %cst_19 : f32 to vector<64x1xf32>
    %32 = arith.mulf %30, %31 : vector<64x1xf32>
    %cst_20 = arith.constant 9.99999997E-7 : f32
    %33 = vector.broadcast %cst_20 : f32 to vector<64x1xf32>
    %34 = arith.addf %32, %33 : vector<64x1xf32>
    %35 = math.rsqrt %34 : vector<64x1xf32>
    %36 = vector.broadcast %35 : vector<64x1xf32> to vector<64x128xf32>
    %37 = arith.mulf %27, %36 : vector<64x128xf32>
    %38 = vector.broadcast %5 : vector<1x128xf32> to vector<64x128xf32>
    %39 = arith.mulf %37, %38 : vector<64x128xf32>
    %40 = arith.negf %39 : vector<64x128xf32>
    %41 = math.exp %40 : vector<64x128xf32>
    %cst_21 = arith.constant 1.000000e+00 : f32
    %42 = vector.broadcast %cst_21 : f32 to vector<64x128xf32>
    %43 = arith.addf %42, %41 : vector<64x128xf32>
    %44 = arith.divf %42, %43 : vector<64x128xf32>
    %45 = arith.mulf %39, %44 : vector<64x128xf32>
    %c0_22 = arith.constant 0 : index
    %c0_23 = arith.constant 0 : index
    %46 = vector.load %arg4[%c0_22, %c0_23] : memref<64x128xf32, #tpu.memory_space<vmem>>, vector<64x128xf32>
    tpu.vector_store %arg4[%c0_22, %c0_23], %45 {strides = array<i32>} : memref<64x128xf32, #tpu.memory_space<vmem>>, vector<64x128xf32>,
    return
  }
}

</mosaic_0001>

<llo_original>
// kernel: forward.1
$region0: #{forward.1}
  #allocation0 [shape = 'u32[]', space=smem, size = 0x4, offset = 0x4, fixed_abs, tag = 'smem constant byte address 0x4 - core index']
  #allocation1 [shape = 'u32[144,128]{1,0:T(1,128)}', space=vmem, size = 0x12000, scoped, tag = 'internal scratch']
  %s0 = inlined_call_operand.vmem [shape: f32[64,128], index: 0, kind: input, shape index: {}, may-alias: {0,4}]
  %s1 = inlined_call_operand.vmem [shape: f32[264,128], index: 1, kind: input, shape index: {}]
  %s2 = inlined_call_operand.vmem [shape: f32[32,64], index: 2, kind: input, shape index: {}]
  %s3 = inlined_call_operand.vmem [shape: f32[64,32], index: 3, kind: input, shape index: {}]
  %s4 = inlined_call_operand.vmem [shape: f32[64,128], index: 4, kind: output, shape index: {}, may-alias: {0,4}]
  %s5 = sld [smem:[#allocation0]]
  $region26: #{forward.1} parent=0
    _
  %s7 = ssub.s32 1, %s5
  %s8 = scalar_select 0, %s7, %s5
  // Predicated region
  $region2: #{forward.1} parent=0 // pred_check
    _
  $region3: #{forward.1} parent=0 // pred_check_branch
    %10 = sbr.rel (0) target = $region5
  $region4: #{forward.1} parent=0 // pred_region
    _
  $region5: #{forward.1} parent=0 // pred_fallthru
    _
  // Predicated region
  $region6: #{forward.1} parent=0 // pred_check
    _
  $region7: #{forward.1} parent=0 // pred_check_branch
    %12 = sbr.rel (0) target = $region9
  $region8: #{forward.1} parent=0 // pred_region
    _
  $region9: #{forward.1} parent=0 // pred_fallthru
    _
  // Predicated region
  $region10: #{forward.1} parent=0 // pred_check
    _
  $region11: #{forward.1} parent=0 // pred_check_branch
    %14 = sbr.rel (0) target = $region13
  $region12: #{forward.1} parent=0 // pred_region
    _
  $region13: #{forward.1} parent=0 // pred_fallthru
    _
  // Predicated region
  $region14: #{forward.1} parent=0 // pred_check
    _
  $region15: #{forward.1} parent=0 // pred_check_branch
    %16 = sbr.rel (0) target = $region17
  $region16: #{forward.1} parent=0 // pred_region
    _
  $region17: #{forward.1} parent=0 // pred_fallthru
    _
  %v17 = vld [vmem:[%s0] sm:$0xff]
  %v18 = vld [vmem:[%s0 + $0x8] sm:$0xff]
  %v19 = vld [vmem:[%s0 + $0x10] sm:$0xff]
  %v20 = vld [vmem:[%s0 + $0x18] sm:$0xff]
  %v21 = vld [vmem:[%s0 + $0x20] sm:$0xff]
  %v22 = vld [vmem:[%s0 + $0x28] sm:$0xff]
  %v23 = vld [vmem:[%s0 + $0x30] sm:$0xff]
  %v24 = vld [vmem:[%s0 + $0x38] sm:$0xff]
  %v25 = vld [vmem:[%s1] sm:$0xff]
  %v26 = vld [vmem:[%s1 + $0x8] sm:$0xff]
  %v27 = vld [vmem:[%s1 + $0x10] sm:$0xff]
  %v28 = vld [vmem:[%s1 + $0x18] sm:$0xff]
  %v29 = vld [vmem:[%s1 + $0x20] sm:$0xff]
  %v30 = vld [vmem:[%s1 + $0x28] sm:$0xff]
  %v31 = vld [vmem:[%s1 + $0x30] sm:$0xff]
  %v32 = vld [vmem:[%s1 + $0x38] sm:$0xff]
  %v33 = vld [vmem:[%s1 + $0x40] sm:$0xff]
  %v34 = vld [vmem:[%s1 + $0x48] sm:$0xff]
  %v35 = vld [vmem:[%s1 + $0x50] sm:$0xff]
  %v36 = vld [vmem:[%s1 + $0x58] sm:$0xff]
  %v37 = vld [vmem:[%s1 + $0x60] sm:$0xff]
  %v38 = vld [vmem:[%s1 + $0x68] sm:$0xff]
  %v39 = vld [vmem:[%s1 + $0x70] sm:$0xff]
  %v40 = vld [vmem:[%s1 + $0x78] sm:$0xff]
  %v41 = vld [vmem:[%s1 + $0x80] sm:$0xff]
  %v42 = vld [vmem:[%s1 + $0x88] sm:$0xff]
  %v43 = vld [vmem:[%s1 + $0x90] sm:$0xff]
  %v44 = vld [vmem:[%s1 + $0x98] sm:$0xff]
  %v45 = vld [vmem:[%s1 + $0xa0] sm:$0xff]
  %v46 = vld [vmem:[%s1 + $0xa8] sm:$0xff]
  %v47 = vld [vmem:[%s1 + $0xb0] sm:$0xff]
  %v48 = vld [vmem:[%s1 + $0xb8] sm:$0xff]
  %v49 = vld [vmem:[%s1 + $0xc0] sm:$0xff]
  %v50 = vld [vmem:[%s1 + $0xc8] sm:$0xff]
  %v51 = vld [vmem:[%s1 + $0xd0] sm:$0xff]
  %v52 = vld [vmem:[%s1 + $0xd8] sm:$0xff]
  %v53 = vld [vmem:[%s1 + $0xe0] sm:$0xff]
  %v54 = vld [vmem:[%s1 + $0xe8] sm:$0xff]
  %v55 = vld [vmem:[%s1 + $0xf0] sm:$0xff]
  %v56 = vld [vmem:[%s1 + $0xf8] sm:$0xff]
  %v57 = vld [vmem:[%s1 + $0x100] sm:$0x1]
  %v58 = vld [vmem:[%s1 + $0x101] sm:$0x1]
  %v59 = vld [vmem:[%s1 + $0x102] sm:$0x1]
  %v60 = vld [vmem:[%s1 + $0x103] sm:$0x1]
  %v61 = vld [vmem:[%s1 + $0x104] sm:$0x1]
  %v62 = vlaneseq
  %v63 = vshrl.u32 %v62, 7
  %v64 = vsub.s32 0, %v63
  %v65 = vrot.slane %v57, %v64
  %66 = vmatprep.subr.mxu0 0.0
  %67 = vmatpush1.msra.mxu0 %v25
  %68 = vmatprep.subr.mxu0 0.0
  %69 = vmatpush1.msra.mxu0 %v26
  %70 = vmatprep.subr.mxu0 0.0
  %71 = vmatpush1.msra.mxu0 %v27
  %72 = vmatprep.subr.mxu0 0.0
  %73 = vmatpush1.msra.mxu0 %v28
  %74 = vmatprep.subr.mxu0 0.0
  %75 = vmatpush1.msra.mxu0 %v29
  %76 = vmatprep.subr.mxu0 0.0
  %77 = vmatpush1.msra.mxu0 %v30
  %78 = vmatprep.subr.mxu0 0.0
  %79 = vmatpush1.msra.mxu0 %v31
  %80 = vmatprep.subr.mxu0 0.0
  %81 = vmatpush1.msra.mxu0 %v32
  %82 = vmatprep.subr.mxu0 0.0
  %83 = vmatpush1.msra.mxu0 %v33
  %84 = vmatprep.subr.mxu0 0.0
  %85 = vmatpush1.msra.mxu0 %v34
  %86 = vmatprep.subr.mxu0 0.0
  %87 = vmatpush1.msra.mxu0 %v35
  %88 = vmatprep.subr.mxu0 0.0
  %89 = vmatpush1.msra.mxu0 %v36
  %90 = vmatprep.subr.mxu0 0.0
  %91 = vmatpush1.msra.mxu0 %v37
  %92 = vmatprep.subr.mxu0 0.0
  %93 = vmatpush1.msra.mxu0 %v38
  %94 = vmatprep.subr.mxu0 0.0
  %95 = vmatpush1.msra.mxu0 %v39
  %96 = vmatprep.subr.mxu0 0.0
  %97 = vmatpush1.msra.mxu0 %v40
  %98 = vmatprep.subr.mxu0 0.0
  %99 = vmatpush1.msra.mxu0 0.0
  %100 = vmatprep.subr.mxu0 0.0
  %101 = vmatpush1.msra.mxu0 0.0
  %102 = vmatprep.subr.mxu0 0.0
  %103 = vmatpush1.msra.mxu0 0.0
  %104 = vmatprep.subr.mxu0 0.0
  %105 = vmatpush1.msra.mxu0 0.0
  %106 = vmatprep.subr.mxu0 0.0
  %107 = vmatpush1.msra.mxu0 0.0
  %108 = vmatprep.subr.mxu0 0.0
  %109 = vmatpush1.msra.mxu0 0.0
  %110 = vmatprep.subr.mxu0 0.0
  %111 = vmatpush1.msra.mxu0 0.0
  %112 = vmatprep.subr.mxu0 0.0
  %113 = vmatpush1.msra.mxu0 0.0
  %114 = vmatprep.subr.mxu0 0.0
  %115 = vmatpush1.msra.mxu0 0.0
  %116 = vmatprep.subr.mxu0 0.0
  %117 = vmatpush1.msra.mxu0 0.0
  %118 = vmatprep.subr.mxu0 0.0
  %119 = vmatpush1.msra.mxu0 0.0
  %120 = vmatprep.subr.mxu0 0.0
  %121 = vmatpush1.msra.mxu0 0.0
  %122 = vmatprep.subr.mxu0 0.0
  %123 = vmatpush1.msra.mxu0 0.0
  %124 = vmatprep.subr.mxu0 0.0
  %125 = vmatpush1.msra.mxu0 0.0
  %126 = vmatprep.subr.mxu0 0.0
  %127 = vmatpush1.msra.mxu0 0.0
  %128 = vmatprep.subr.mxu0 0.0
  %129 = vmatpush1.msra.mxu0 0.0
  %130 = vmatprep.mubr.f32.mxu0 0.0
  %131 = vmatmul.mubr.f32.gmra.mrb[0].mxu0 %v17
  %v132 = vpop.f32.mrb[0].mxu0
  %v133 = vadd.f32 %v65, %v132
  %v134 = vpop.f32.mrb[0].mxu0
  %135 = vmatprep.mubr.f32.mxu0 0.0
  %136 = vmatmul.mubr.f32.gmra.mrb[0].mxu0 %v18
  %v137 = vpop.f32.mrb[0].mxu0
  %v138 = vadd.f32 %v65, %v137
  %v139 = vpop.f32.mrb[0].mxu0
  %140 = vmatprep.mubr.f32.mxu0 0.0
  %141 = vmatmul.mubr.f32.gmra.mrb[0].mxu0 %v19
  %v142 = vpop.f32.mrb[0].mxu0
  %v143 = vadd.f32 %v65, %v142
  %v144 = vpop.f32.mrb[0].mxu0
  %145 = vmatprep.mubr.f32.mxu0 0.0
  %146 = vmatmul.mubr.f32.gmra.mrb[0].mxu0 %v20
  %v147 = vpop.f32.mrb[0].mxu0
  %v148 = vadd.f32 %v65, %v147
  %v149 = vpop.f32.mrb[0].mxu0
  %150 = vmatprep.mubr.f32.mxu0 0.0
  %151 = vmatmul.mubr.f32.gmra.mrb[0].mxu0 %v21
  %v152 = vpop.f32.mrb[0].mxu0
  %v153 = vadd.f32 %v65, %v152
  %v154 = vpop.f32.mrb[0].mxu0
  %155 = vmatprep.mubr.f32.mxu0 0.0
  %156 = vmatmul.mubr.f32.gmra.mrb[0].mxu0 %v22
  %v157 = vpop.f32.mrb[0].mxu0
  %v158 = vadd.f32 %v65, %v157
  %v159 = vpop.f32.mrb[0].mxu0
  %160 = vmatprep.mubr.f32.mxu0 0.0
  %161 = vmatmul.mubr.f32.gmra.mrb[0].mxu0 %v23
  %v162 = vpop.f32.mrb[0].mxu0
  %v163 = vadd.f32 %v65, %v162
  %v164 = vpop.f32.mrb[0].mxu0
  %165 = vmatprep.mubr.f32.mxu0 0.0
  %166 = vmatmul.mubr.f32.gmra.mrb[0].mxu0 %v24
  %v167 = vpop.f32.mrb[0].mxu0
  %v168 = vadd.f32 %v65, %v167
  %v169 = vpop.f32.mrb[0].mxu0
  %170 = vdwg.mxu0
  %v171 = vmax.f32 %v133, 0.0
  %v172 = vmax.f32 %v138, 0.0
  %v173 = vmax.f32 %v143, 0.0
  %v174 = vmax.f32 %v148, 0.0
  %v175 = vmax.f32 %v153, 0.0
  %v176 = vmax.f32 %v158, 0.0
  %v177 = vmax.f32 %v163, 0.0
  %v178 = vmax.f32 %v168, 0.0
  %v179 = vlaneseq
  %v180 = vshrl.u32 %v179, 7
  %v181 = vsub.s32 0, %v180
  %v182 = vrot.slane %v58, %v181
  %183 = vmatprep.subr.mxu0 0.0
  %184 = vmatpush1.msra.mxu0 %v41
  %185 = vmatprep.subr.mxu0 0.0
  %186 = vmatpush1.msra.mxu0 %v42
  %187 = vmatprep.subr.mxu0 0.0
  %188 = vmatpush1.msra.mxu0 %v43
  %189 = vmatprep.subr.mxu0 0.0
  %190 = vmatpush1.msra.mxu0 %v44
  %191 = vmatprep.subr.mxu0 0.0
  %192 = vmatpush1.msra.mxu0 %v45
  %193 = vmatprep.subr.mxu0 0.0
  %194 = vmatpush1.msra.mxu0 %v46
  %195 = vmatprep.subr.mxu0 0.0
  %196 = vmatpush1.msra.mxu0 %v47
  %197 = vmatprep.subr.mxu0 0.0
  %198 = vmatpush1.msra.mxu0 %v48
  %199 = vmatprep.subr.mxu0 0.0
  %200 = vmatpush1.msra.mxu0 %v49
  %201 = vmatprep.subr.mxu0 0.0
  %202 = vmatpush1.msra.mxu0 %v50
  %203 = vmatprep.subr.mxu0 0.0
  %204 = vmatpush1.msra.mxu0 %v51
  %205 = vmatprep.subr.mxu0 0.0
  %206 = vmatpush1.msra.mxu0 %v52
  %207 = vmatprep.subr.mxu0 0.0
  %208 = vmatpush1.msra.mxu0 %v53
  %209 = vmatprep.subr.mxu0 0.0
  %210 = vmatpush1.msra.mxu0 %v54
  %211 = vmatprep.subr.mxu0 0.0
  %212 = vmatpush1.msra.mxu0 %v55
  %213 = vmatprep.subr.mxu0 0.0
  %214 = vmatpush1.msra.mxu0 %v56
  %215 = vmatprep.subr.mxu0 0.0
  %216 = vmatpush1.msra.mxu0 0.0
  %217 = vmatprep.subr.mxu0 0.0
  %218 = vmatpush1.msra.mxu0 0.0
  %219 = vmatprep.subr.mxu0 0.0
  %220 = vmatpush1.msra.mxu0 0.0
  %221 = vmatprep.subr.mxu0 0.0
  %222 = vmatpush1.msra.mxu0 0.0
  %223 = vmatprep.subr.mxu0 0.0
  %224 = vmatpush1.msra.mxu0 0.0
  %225 = vmatprep.subr.mxu0 0.0
  %226 = vmatpush1.msra.mxu0 0.0
  %227 = vmatprep.subr.mxu0 0.0
  %228 = vmatpush1.msra.mxu0 0.0
  %229 = vmatprep.subr.mxu0 0.0
  %230 = vmatpush1.msra.mxu0 0.0
  %231 = vmatprep.subr.mxu0 0.0
  %232 = vmatpush1.msra.mxu0 0.0
  %233 = vmatprep.subr.mxu0 0.0
  %234 = vmatpush1.msra.mxu0 0.0
  %235 = vmatprep.subr.mxu0 0.0
  %236 = vmatpush1.msra.mxu0 0.0
  %237 = vmatprep.subr.mxu0 0.0
  %238 = vmatpush1.msra.mxu0 0.0
  %239 = vmatprep.subr.mxu0 0.0
  %240 = vmatpush1.msra.mxu0 0.0
  %241 = vmatprep.subr.mxu0 0.0
  %242 = vmatpush1.msra.mxu0 0.0
  %243 = vmatprep.subr.mxu0 0.0
  %244 = vmatpush1.msra.mxu0 0.0
  %245 = vmatprep.subr.mxu0 0.0
  %246 = vmatpush1.msra.mxu0 0.0
  %247 = vmatprep.mubr.f32.mxu0 0.0
  %248 = vmatmul.mubr.f32.gmra.mrb[0].mxu0 %v171
  %v249 = vpop.f32.mrb[0].mxu0
  %v250 = vadd.f32 %v182, %v249
  %v251 = vpop.f32.mrb[0].mxu0
  %252 = vmatprep.mubr.f32.mxu0 0.0
  %253 = vmatmul.mubr.f32.gmra.mrb[0].mxu0 %v172
  %v254 = vpop.f32.mrb[0].mxu0
  %v255 = vadd.f32 %v182, %v254
  %v256 = vpop.f32.mrb[0].mxu0
  %257 = vmatprep.mubr.f32.mxu0 0.0
  %258 = vmatmul.mubr.f32.gmra.mrb[0].mxu0 %v173
  %v259 = vpop.f32.mrb[0].mxu0
  %v260 = vadd.f32 %v182, %v259
  %v261 = vpop.f32.mrb[0].mxu0
  %262 = vmatprep.mubr.f32.mxu0 0.0
  %263 = vmatmul.mubr.f32.gmra.mrb[0].mxu0 %v174
  %v264 = vpop.f32.mrb[0].mxu0
  %v265 = vadd.f32 %v182, %v264
  %v266 = vpop.f32.mrb[0].mxu0
  %267 = vmatprep.mubr.f32.mxu0 0.0
  %268 = vmatmul.mubr.f32.gmra.mrb[0].mxu0 %v175
  %v269 = vpop.f32.mrb[0].mxu0
  %v270 = vadd.f32 %v182, %v269
  %v271 = vpop.f32.mrb[0].mxu0
  %272 = vmatprep.mubr.f32.mxu0 0.0
  %273 = vmatmul.mubr.f32.gmra.mrb[0].mxu0 %v176
  %v274 = vpop.f32.mrb[0].mxu0
  %v275 = vadd.f32 %v182, %v274
  %v276 = vpop.f32.mrb[0].mxu0
  %277 = vmatprep.mubr.f32.mxu0 0.0
  %278 = vmatmul.mubr.f32.gmra.mrb[0].mxu0 %v177
  %v279 = vpop.f32.mrb[0].mxu0
  %v280 = vadd.f32 %v182, %v279
  %v281 = vpop.f32.mrb[0].mxu0
  %282 = vmatprep.mubr.f32.mxu0 0.0
  %283 = vmatmul.mubr.f32.gmra.mrb[0].mxu0 %v178
  %v284 = vpop.f32.mrb[0].mxu0
  %v285 = vadd.f32 %v182, %v284
  %v286 = vpop.f32.mrb[0].mxu0
  %287 = vdwg.mxu0
  %v288 = vld [vmem:[%s2] sm:$0xff]
  %v289 = vld [vmem:[%s2 + $0x8] sm:$0xff]
  %v290 = vld [vmem:[%s2 + $0x10] sm:$0xff]
  %v291 = vld [vmem:[%s2 + $0x18] sm:$0xff]
  %v292 = vlaneseq
  %v293 = vshrl.u32 %v292, 7
  %v294 = vsub.s32 0, %v293
  %v295 = vrot.slane %v60, %v294
  %vm296 = vcmask 523264
  %v298 = vsel %vm296, %v288, 0
  %v301 = vsel %vm296, %v289, 0
  %v304 = vsel %vm296, %v290, 0
  %v307 = vsel %vm296, %v291, 0
  %309 = vmatprep.subr.mxu0 0.0
  %310 = vmatpush1.msra.mxu0 %v17
  %311 = vmatprep.subr.mxu0 0.0
  %312 = vmatpush1.msra.mxu0 %v18
  %313 = vmatprep.subr.mxu0 0.0
  %314 = vmatpush1.msra.mxu0 %v19
  %315 = vmatprep.subr.mxu0 0.0
  %316 = vmatpush1.msra.mxu0 %v20
  %317 = vmatprep.subr.mxu0 0.0
  %318 = vmatpush1.msra.mxu0 %v21
  %319 = vmatprep.subr.mxu0 0.0
  %320 = vmatpush1.msra.mxu0 %v22
  %321 = vmatprep.subr.mxu0 0.0
  %322 = vmatpush1.msra.mxu0 %v23
  %323 = vmatprep.subr.mxu0 0.0
  %324 = vmatpush1.msra.mxu0 %v24
  %325 = vmatprep.subr.mxu0 0.0
  %326 = vmatpush1.msra.mxu0 0.0
  %327 = vmatprep.subr.mxu0 0.0
  %328 = vmatpush1.msra.mxu0 0.0
  %329 = vmatprep.subr.mxu0 0.0
  %330 = vmatpush1.msra.mxu0 0.0
  %331 = vmatprep.subr.mxu0 0.0
  %332 = vmatpush1.msra.mxu0 0.0
  %333 = vmatprep.subr.mxu0 0.0
  %334 = vmatpush1.msra.mxu0 0.0
  %335 = vmatprep.subr.mxu0 0.0
  %336 = vmatpush1.msra.mxu0 0.0
  %337 = vmatprep.subr.mxu0 0.0
  %338 = vmatpush1.msra.mxu0 0.0
  %339 = vmatprep.subr.mxu0 0.0
  %340 = vmatpush1.msra.mxu0 0.0
  %341 = vmatprep.subr.mxu0 0.0
  %342 = vmatpush1.msra.mxu0 0.0
  %343 = vmatprep.subr.mxu0 0.0
  %344 = vmatpush1.msra.mxu0 0.0
  %345 = vmatprep.subr.mxu0 0.0
  %346 = vmatpush1.msra.mxu0 0.0
  %347 = vmatprep.subr.mxu0 0.0
  %348 = vmatpush1.msra.mxu0 0.0
  %349 = vmatprep.subr.mxu0 0.0
  %350 = vmatpush1.msra.mxu0 0.0
  %351 = vmatprep.subr.mxu0 0.0
  %352 = vmatpush1.msra.mxu0 0.0
  %353 = vmatprep.subr.mxu0 0.0
  %354 = vmatpush1.msra.mxu0 0.0
  %355 = vmatprep.subr.mxu0 0.0
  %356 = vmatpush1.msra.mxu0 0.0
  %357 = vmatprep.subr.mxu0 0.0
  %358 = vmatpush1.msra.mxu0 0.0
  %359 = vmatprep.subr.mxu0 0.0
  %360 = vmatpush1.msra.mxu0 0.0
  %361 = vmatprep.subr.mxu0 0.0
  %362 = vmatpush1.msra.mxu0 0.0
  %363 = vmatprep.subr.mxu0 0.0
  %364 = vmatpush1.msra.mxu0 0.0
  %365 = vmatprep.subr.mxu0 0.0
  %366 = vmatpush1.msra.mxu0 0.0
  %367 = vmatprep.subr.mxu0 0.0
  %368 = vmatpush1.msra.mxu0 0.0
  %369 = vmatprep.subr.mxu0 0.0
  %370 = vmatpush1.msra.mxu0 0.0
  %371 = vmatprep.subr.mxu0 0.0
  %372 = vmatpush1.msra.mxu0 0.0
  %373 = vmatprep.mubr.f32.mxu0 0.0
  %374 = vmatmul.mubr.f32.gmra.mrb[0].mxu0 %v298
  %v375 = vpop.f32.mrb[0].mxu0
  %v376 = vadd.f32 %v295, %v375
  %v377 = vpop.f32.mrb[0].mxu0
  %378 = vmatprep.mubr.f32.mxu0 0.0
  %379 = vmatmul.mubr.f32.gmra.mrb[0].mxu0 %v301
  %v380 = vpop.f32.mrb[0].mxu0
  %v381 = vadd.f32 %v295, %v380
  %v382 = vpop.f32.mrb[0].mxu0
  %383 = vmatprep.mubr.f32.mxu0 0.0
  %384 = vmatmul.mubr.f32.gmra.mrb[0].mxu0 %v304
  %v385 = vpop.f32.mrb[0].mxu0
  %v386 = vadd.f32 %v295, %v385
  %v387 = vpop.f32.mrb[0].mxu0
  %388 = vmatprep.mubr.f32.mxu0 0.0
  %389 = vmatmul.mubr.f32.gmra.mrb[0].mxu0 %v307
  %v390 = vpop.f32.mrb[0].mxu0
  %v391 = vadd.f32 %v295, %v390
  %v392 = vpop.f32.mrb[0].mxu0
  %393 = vdwg.mxu0
  %v394 = vmax.f32 %v376, 0.0
  %v395 = vmax.f32 %v381, 0.0
  %v396 = vmax.f32 %v386, 0.0
  %v397 = vmax.f32 %v391, 0.0
  %v398 = vld [vmem:[%s3] sm:$0xff]
  %v399 = vld [vmem:[%s3 + $0x8] sm:$0xff]
  %v400 = vld [vmem:[%s3 + $0x10] sm:$0xff]
  %v401 = vld [vmem:[%s3 + $0x18] sm:$0xff]
  %v402 = vld [vmem:[%s3 + $0x20] sm:$0xff]
  %v403 = vld [vmem:[%s3 + $0x28] sm:$0xff]
  %v404 = vld [vmem:[%s3 + $0x30] sm:$0xff]
  %v405 = vld [vmem:[%s3 + $0x38] sm:$0xff]
  %v406 = vlaneseq
  %v407 = vshrl.u32 %v406, 7
  %v408 = vsub.s32 0, %v407
  %v409 = vrot.slane %v61, %v408
  %vm410 = vcmask 261120
  %v412 = vsel %vm410, %v398, 0
  %v415 = vsel %vm410, %v399, 0
  %v418 = vsel %vm410, %v400, 0
  %v421 = vsel %vm410, %v401, 0
  %v424 = vsel %vm410, %v402, 0
  %v427 = vsel %vm410, %v403, 0
  %v430 = vsel %vm410, %v404, 0
  %v433 = vsel %vm410, %v405, 0
  %435 = vmatprep.subr.mxu0 0.0
  %436 = vmatpush1.msra.mxu0 %v394
  %437 = vmatprep.subr.mxu0 0.0
  %438 = vmatpush1.msra.mxu0 %v395
  %439 = vmatprep.subr.mxu0 0.0
  %440 = vmatpush1.msra.mxu0 %v396
  %441 = vmatprep.subr.mxu0 0.0
  %442 = vmatpush1.msra.mxu0 %v397
  %443 = vmatprep.subr.mxu0 0.0
  %444 = vmatpush1.msra.mxu0 0.0
  %445 = vmatprep.subr.mxu0 0.0
  %446 = vmatpush1.msra.mxu0 0.0
  %447 = vmatprep.subr.mxu0 0.0
  %448 = vmatpush1.msra.mxu0 0.0
  %449 = vmatprep.subr.mxu0 0.0
  %450 = vmatpush1.msra.mxu0 0.0
  %451 = vmatprep.subr.mxu0 0.0
  %452 = vmatpush1.msra.mxu0 0.0
  %453 = vmatprep.subr.mxu0 0.0
  %454 = vmatpush1.msra.mxu0 0.0
  %455 = vmatprep.subr.mxu0 0.0
  %456 = vmatpush1.msra.mxu0 0.0
  %457 = vmatprep.subr.mxu0 0.0
  %458 = vmatpush1.msra.mxu0 0.0
  %459 = vmatprep.subr.mxu0 0.0
  %460 = vmatpush1.msra.mxu0 0.0
  %461 = vmatprep.subr.mxu0 0.0
  %462 = vmatpush1.msra.mxu0 0.0
  %463 = vmatprep.subr.mxu0 0.0
  %464 = vmatpush1.msra.mxu0 0.0
  %465 = vmatprep.subr.mxu0 0.0
  %466 = vmatpush1.msra.mxu0 0.0
  %467 = vmatprep.subr.mxu0 0.0
  %468 = vmatpush1.msra.mxu0 0.0
  %469 = vmatprep.subr.mxu0 0.0
  %470 = vmatpush1.msra.mxu0 0.0
  %471 = vmatprep.subr.mxu0 0.0
  %472 = vmatpush1.msra.mxu0 0.0
  %473 = vmatprep.subr.mxu0 0.0
  %474 = vmatpush1.msra.mxu0 0.0
  %475 = vmatprep.subr.mxu0 0.0
  %476 = vmatpush1.msra.mxu0 0.0
  %477 = vmatprep.subr.mxu0 0.0
  %478 = vmatpush1.msra.mxu0 0.0
  %479 = vmatprep.subr.mxu0 0.0
  %480 = vmatpush1.msra.mxu0 0.0
  %481 = vmatprep.subr.mxu0 0.0
  %482 = vmatpush1.msra.mxu0 0.0
  %483 = vmatprep.subr.mxu0 0.0
  %484 = vmatpush1.msra.mxu0 0.0
  %485 = vmatprep.subr.mxu0 0.0
  %486 = vmatpush1.msra.mxu0 0.0
  %487 = vmatprep.subr.mxu0 0.0
  %488 = vmatpush1.msra.mxu0 0.0
  %489 = vmatprep.subr.mxu0 0.0
  %490 = vmatpush1.msra.mxu0 0.0
  %491 = vmatprep.subr.mxu0 0.0
  %492 = vmatpush1.msra.mxu0 0.0
  %493 = vmatprep.subr.mxu0 0.0
  %494 = vmatpush1.msra.mxu0 0.0
  %495 = vmatprep.subr.mxu0 0.0
  %496 = vmatpush1.msra.mxu0 0.0
  %497 = vmatprep.subr.mxu0 0.0
  %498 = vmatpush1.msra.mxu0 0.0
  %499 = vmatprep.mubr.f32.mxu0 0.0
  %500 = vmatmul.mubr.f32.gmra.mrb[0].mxu0 %v412
  %v501 = vpop.f32.mrb[0].mxu0
  %v502 = vadd.f32 %v409, %v501
  %v503 = vpop.f32.mrb[0].mxu0
  %504 = vmatprep.mubr.f32.mxu0 0.0
  %505 = vmatmul.mubr.f32.gmra.mrb[0].mxu0 %v415
  %v506 = vpop.f32.mrb[0].mxu0
  %v507 = vadd.f32 %v409, %v506
  %v508 = vpop.f32.mrb[0].mxu0
  %509 = vmatprep.mubr.f32.mxu0 0.0
  %510 = vmatmul.mubr.f32.gmra.mrb[0].mxu0 %v418
  %v511 = vpop.f32.mrb[0].mxu0
  %v512 = vadd.f32 %v409, %v511
  %v513 = vpop.f32.mrb[0].mxu0
  %514 = vmatprep.mubr.f32.mxu0 0.0
  %515 = vmatmul.mubr.f32.gmra.mrb[0].mxu0 %v421
  %v516 = vpop.f32.mrb[0].mxu0
  %v517 = vadd.f32 %v409, %v516
  %v518 = vpop.f32.mrb[0].mxu0
  %519 = vmatprep.mubr.f32.mxu0 0.0
  %520 = vmatmul.mubr.f32.gmra.mrb[0].mxu0 %v424
  %v521 = vpop.f32.mrb[0].mxu0
  %v522 = vadd.f32 %v409, %v521
  %v523 = vpop.f32.mrb[0].mxu0
  %524 = vmatprep.mubr.f32.mxu0 0.0
  %525 = vmatmul.mubr.f32.gmra.mrb[0].mxu0 %v427
  %v526 = vpop.f32.mrb[0].mxu0
  %v527 = vadd.f32 %v409, %v526
  %v528 = vpop.f32.mrb[0].mxu0
  %529 = vmatprep.mubr.f32.mxu0 0.0
  %530 = vmatmul.mubr.f32.gmra.mrb[0].mxu0 %v430
  %v531 = vpop.f32.mrb[0].mxu0
  %v532 = vadd.f32 %v409, %v531
  %v533 = vpop.f32.mrb[0].mxu0
  %534 = vmatprep.mubr.f32.mxu0 0.0
  %535 = vmatmul.mubr.f32.gmra.mrb[0].mxu0 %v433
  %v536 = vpop.f32.mrb[0].mxu0
  %v537 = vadd.f32 %v409, %v536
  %v538 = vpop.f32.mrb[0].mxu0
  %539 = vdwg.mxu0
  %v540 = vadd.f32 %v17, %v250
  %v541 = vadd.f32 %v18, %v255
  %v542 = vadd.f32 %v19, %v260
  %v543 = vadd.f32 %v20, %v265
  %v544 = vadd.f32 %v21, %v270
  %v545 = vadd.f32 %v22, %v275
  %v546 = vadd.f32 %v23, %v280
  %v547 = vadd.f32 %v24, %v285
  %v548 = vadd.f32 %v540, %v502
  %v549 = vadd.f32 %v541, %v507
  %v550 = vadd.f32 %v542, %v512
  %v551 = vadd.f32 %v543, %v517
  %v552 = vadd.f32 %v544, %v522
  %v553 = vadd.f32 %v545, %v527
  %v554 = vadd.f32 %v546, %v532
  %v555 = vadd.f32 %v547, %v537
  %v556 = vmul.f32 %v548, %v548
  %v557 = vmul.f32 %v549, %v549
  %v558 = vmul.f32 %v550, %v550
  %v559 = vmul.f32 %v551, %v551
  %v560 = vmul.f32 %v552, %v552
  %v561 = vmul.f32 %v553, %v553
  %v562 = vmul.f32 %v554, %v554
  %v563 = vmul.f32 %v555, %v555
  %564 = vadd.xlane.f32.xlu0 %v556
  %v565 = vpop.xlane.xlu0 %564
  %566 = vadd.xlane.f32.xlu0 %v557
  %v567 = vpop.xlane.xlu0 %566
  %568 = vadd.xlane.f32.xlu0 %v558
  %v569 = vpop.xlane.xlu0 %568
  %570 = vadd.xlane.f32.xlu0 %v559
  %v571 = vpop.xlane.xlu0 %570
  %572 = vadd.xlane.f32.xlu0 %v560
  %v573 = vpop.xlane.xlu0 %572
  %574 = vadd.xlane.f32.xlu0 %v561
  %v575 = vpop.xlane.xlu0 %574
  %576 = vadd.xlane.f32.xlu0 %v562
  %v577 = vpop.xlane.xlu0 %576
  %578 = vadd.xlane.f32.xlu0 %v563
  %v579 = vpop.xlane.xlu0 %578
  %v580 = vmul.f32 %v565, 0.0625
  %v581 = vmul.f32 %v567, 0.0625
  %v582 = vmul.f32 %v569, 0.0625
  %v583 = vmul.f32 %v571, 0.0625
  %v584 = vmul.f32 %v573, 0.0625
  %v585 = vmul.f32 %v575, 0.0625
  %v586 = vmul.f32 %v577, 0.0625
  %v587 = vmul.f32 %v579, 0.0625
  %v588 = vadd.f32 %v580, 1e-06
  %v589 = vadd.f32 %v581, 1e-06
  %v590 = vadd.f32 %v582, 1e-06
  %v591 = vadd.f32 %v583, 1e-06
  %v592 = vadd.f32 %v584, 1e-06
  %v593 = vadd.f32 %v585, 1e-06
  %v594 = vadd.f32 %v586, 1e-06
  %v595 = vadd.f32 %v587, 1e-06
  %v596 = vrsqrt.pop %v588
  %v597 = vrsqrt.pop %v589
  %v598 = vrsqrt.pop %v590
  %v599 = vrsqrt.pop %v591
  %v600 = vrsqrt.pop %v592
  %v601 = vrsqrt.pop %v593
  %v602 = vrsqrt.pop %v594
  %v603 = vrsqrt.pop %v595
  %v604 = vmul.f32 %v548, %v596
  %v605 = vmul.f32 %v549, %v597
  %v606 = vmul.f32 %v550, %v598
  %v607 = vmul.f32 %v551, %v599
  %v608 = vmul.f32 %v552, %v600
  %v609 = vmul.f32 %v553, %v601
  %v610 = vmul.f32 %v554, %v602
  %v611 = vmul.f32 %v555, %v603
  %v612 = vlaneseq
  %v613 = vshrl.u32 %v612, 7
  %v614 = vsub.s32 0, %v613
  %v615 = vrot.slane %v59, %v614
  %v616 = vmul.f32 %v604, %v615
  %v617 = vmul.f32 %v605, %v615
  %v618 = vmul.f32 %v606, %v615
  %v619 = vmul.f32 %v607, %v615
  %v620 = vmul.f32 %v608, %v615
  %v621 = vmul.f32 %v609, %v615
  %v622 = vmul.f32 %v610, %v615
  %v623 = vmul.f32 %v611, %v615
  %v624 = vxor.u32 %v616, 2147483648
  %v625 = vxor.u32 %v617, 2147483648
  %v626 = vxor.u32 %v618, 2147483648
  %v627 = vxor.u32 %v619, 2147483648
  %v628 = vxor.u32 %v620, 2147483648
  %v629 = vxor.u32 %v621, 2147483648
  %v630 = vxor.u32 %v622, 2147483648
  %v631 = vxor.u32 %v623, 2147483648
  %v632 = vmul.f32 %v624, 1.442695
  %v633 = vpow.pop %v632
  %v634 = vmul.f32 %v625, 1.442695
  %v635 = vpow.pop %v634
  %v636 = vmul.f32 %v626, 1.442695
  %v637 = vpow.pop %v636
  %v638 = vmul.f32 %v627, 1.442695
  %v639 = vpow.pop %v638
  %v640 = vmul.f32 %v628, 1.442695
  %v641 = vpow.pop %v640
  %v642 = vmul.f32 %v629, 1.442695
  %v643 = vpow.pop %v642
  %v644 = vmul.f32 %v630, 1.442695
  %v645 = vpow.pop %v644
  %v646 = vmul.f32 %v631, 1.442695
  %v647 = vpow.pop %v646
  %v648 = vadd.f32 %v633, 1.0
  %v649 = vadd.f32 %v635, 1.0
  %v650 = vadd.f32 %v637, 1.0
  %v651 = vadd.f32 %v639, 1.0
  %v652 = vadd.f32 %v641, 1.0
  %v653 = vadd.f32 %v643, 1.0
  %v654 = vadd.f32 %v645, 1.0
  %v655 = vadd.f32 %v647, 1.0
  %v656 = vrcp.pop %v648
  %v657 = vmul.f32 1.0, %v656
  %v658 = vrcp.pop %v649
  %v659 = vmul.f32 1.0, %v658
  %v660 = vrcp.pop %v650
  %v661 = vmul.f32 1.0, %v660
  %v662 = vrcp.pop %v651
  %v663 = vmul.f32 1.0, %v662
  %v664 = vrcp.pop %v652
  %v665 = vmul.f32 1.0, %v664
  %v666 = vrcp.pop %v653
  %v667 = vmul.f32 1.0, %v666
  %v668 = vrcp.pop %v654
  %v669 = vmul.f32 1.0, %v668
  %v670 = vrcp.pop %v655
  %v671 = vmul.f32 1.0, %v670
  %v672 = vmul.f32 %v616, %v657
  %v673 = vmul.f32 %v617, %v659
  %v674 = vmul.f32 %v618, %v661
  %v675 = vmul.f32 %v619, %v663
  %v676 = vmul.f32 %v620, %v665
  %v677 = vmul.f32 %v621, %v667
  %v678 = vmul.f32 %v622, %v669
  %v679 = vmul.f32 %v623, %v671
  %680 = vst [vmem:[%s4] sm:$0xff] %v672
  %681 = vst [vmem:[%s4 + $0x8] sm:$0xff] %v673
  %682 = vst [vmem:[%s4 + $0x10] sm:$0xff] %v674
  %683 = vst [vmem:[%s4 + $0x18] sm:$0xff] %v675
  %684 = vst [vmem:[%s4 + $0x20] sm:$0xff] %v676
  %685 = vst [vmem:[%s4 + $0x28] sm:$0xff] %v677
  %686 = vst [vmem:[%s4 + $0x30] sm:$0xff] %v678
  %687 = vst [vmem:[%s4 + $0x38] sm:$0xff] %v679
  // Predicated region
  $region18: #{forward.1} parent=0 // pred_check
    _
  $region19: #{forward.1} parent=0 // pred_check_branch
    %689 = sbr.rel (0) target = $region21
  $region20: #{forward.1} parent=0 // pred_region
    _
  $region21: #{forward.1} parent=0 // pred_fallthru
    _
  // Predicated region
  $region22: #{forward.1} parent=0 // pred_check
    _
  $region23: #{forward.1} parent=0 // pred_check_branch
    %691 = sbr.rel (0) target = $region25
  $region24: #{forward.1} parent=0 // pred_region
    _
  $region25: #{forward.1} parent=0 // pred_fallthru
    _

</llo_original>
